<compile_context>
chip_gen: v6e
topology: v6e:2x2x1
jax: 0.10.0
libtpu: 0.0.40
codegen_flags: <defaults>
</compile_context>

<pallas_src>
import numpy as np
import jax
import jax.numpy as jnp
from jax import lax
from jax.experimental import pallas as pl
from jax.experimental.pallas import tpu as pltpu

NUM_JOINTS = 18            # bones; root + 18 bones = 19 joint positions
NUM_POSITIONS = 19
HIDDEN = 64                # per-branch hidden width
IN_DIM = 34                # 2 * 17 keypoints
H_COMB = 2 * HIDDEN        # 128 : lane-dense combined hidden
H2_W = 128                 # second layer padded to a full 128-lane group
OUT_W = 128                # packed output slab (34 uv + 57 pos + pad)

# column layout of h2 (combined, planar second-layer output)
BL_OFF = 0                                 # bone lengths (18)
ROOT_OFF = 18                              # root xyz (3)
QW_OFF, QX_OFF, QY_OFF, QZ_OFF = 21, 39, 57, 75

# column layout of the fused FK/projection matmul result & of the output slab
UV_OFF = 0                                 # 34 = (u,v) interleaved, kept joints
POS_OFF = 34                               # 57 = (x,y,z) interleaved, all joints
CW_OFF = 91                                # 34 = cw duplicated per kept (u,v) lane

# joints kept for pose_2d (drops joints 9 and 10, as in the reference module)
KEPT = list(range(9)) + list(range(11, NUM_POSITIONS))   # 17 joints


# ----------------------------------------------------------------------------
# constants: camera, orthographic projection (projection_type == 0), skeleton,
# the fused FK + camera/projection matrix and the packed kernel constants.
# ----------------------------------------------------------------------------
def build_constants():
    camera = np.array([[-1, 0, 0, 0],
                       [0, -1, 0, 0],
                       [0, 0, 1, -100],
                       [0, 0, 0, 1]], dtype=np.float32)
    l, r, b, t, n, f = (-50, 50, -50, 50, -20, -300)
    proj = np.array([[2 / (r - l), 0, 0, 0],
                     [0, 2 / (t - b), 0, 0],
                     [0, 0, 2 / (f - n), 0],
                     [-(r + l) / (r - l), -(t + b) / (t - b), -(f + n) / (f - n), 1]],
                    dtype=np.float32).T
    M = proj @ camera                                   # column-vector convention

    # simple 19-joint kinematic tree (root = joint 0, bone k -> joint k+1)
    parents = [-1, 0, 1, 2, 0, 4, 5, 0, 7, 8, 9, 8, 11, 12, 8, 14, 15, 13, 16]
    A = np.zeros((NUM_POSITIONS, NUM_JOINTS), dtype=np.float32)
    for j in range(1, NUM_POSITIONS):
        A[j] = A[parents[j]]
        A[j, j - 1] = 1.0
    At = np.ascontiguousarray(A.T)                      # (18, 19)

    # deterministic canonical bone directions (unit), passed as kernel constants
    rng = np.random.RandomState(1)
    d = rng.normal(size=(3, NUM_JOINTS)).astype(np.float32)
    dirs = d / (np.linalg.norm(d, axis=0, keepdims=True) + 1e-8)

    # Fused FK + camera/projection matrix (57, 128):
    #   rows: [rx(18) | ry(18) | rz(18) | root_x root_y root_z]
    #   cols: [uv interleaved for KEPT joints (34) |
    #          pos interleaved x0,y0,z0,...,z18 (57) |
    #          cw duplicated per (u,v) lane (34) | pad(3)]
    c_fake = np.float32(1.0 / (1.0 + 1e-9))             # baked (dead) homogeneous divide
    fkp = np.zeros((57, OUT_W), dtype=np.float32)
    for axis in range(3):                               # rotated-bone row blocks
        rows = slice(axis * NUM_JOINTS, (axis + 1) * NUM_JOINTS)
        fkp[rows, POS_OFF + axis:POS_OFF + 3 * NUM_POSITIONS:3] = c_fake * At
        for kk, j in enumerate(KEPT):
            fkp[rows, UV_OFF + 2 * kk]     = M[0, axis] * At[:, j]
            fkp[rows, UV_OFF + 2 * kk + 1] = M[1, axis] * At[:, j]
            fkp[rows, CW_OFF + 2 * kk]     = M[3, axis] * At[:, j]
            fkp[rows, CW_OFF + 2 * kk + 1] = M[3, axis] * At[:, j]
    for axis in range(3):                               # root translation rows
        rrow = 3 * NUM_JOINTS + axis
        fkp[rrow, POS_OFF + axis:POS_OFF + 3 * NUM_POSITIONS:3] = c_fake
        for kk, j in enumerate(KEPT):
            fkp[rrow, UV_OFF + 2 * kk]     = M[0, axis]
            fkp[rrow, UV_OFF + 2 * kk + 1] = M[1, axis]
            fkp[rrow, CW_OFF + 2 * kk]     = M[3, axis]
            fkp[rrow, CW_OFF + 2 * kk + 1] = M[3, axis]

    # packed small constants (4, 128): rows 0..2 = bone dirs (first 18 lanes),
    # row 3 = constant projection bias (the homogeneous w == 1 term).
    consts = np.zeros((4, OUT_W), dtype=np.float32)
    consts[0:3, :NUM_JOINTS] = dirs
    consts[3, UV_OFF:UV_OFF + 34:2]     = M[0, 3]       # u lanes
    consts[3, UV_OFF + 1:UV_OFF + 35:2] = M[1, 3]       # v lanes
    consts[3, CW_OFF:CW_OFF + 34]       = M[3, 3]       # duplicated cw lanes
    return M, A, dirs, fkp, consts


# ----------------------------------------------------------------------------
# parameters (synthetic encoder_S / encoder_Q), fused into lane-dense blocks
# ----------------------------------------------------------------------------
def init_params(key):
    ks = jax.random.split(key, 4)
    q_out = 4 * NUM_JOINTS + 3
    w1_s = 0.1 * jax.random.normal(ks[0], (IN_DIM, HIDDEN), jnp.float32)
    w2_s = 0.1 * jax.random.normal(ks[1], (HIDDEN, NUM_JOINTS), jnp.float32)
    w1_q = 0.1 * jax.random.normal(ks[2], (IN_DIM, HIDDEN), jnp.float32)
    w2_q = 0.1 * jax.random.normal(ks[3], (HIDDEN, q_out), jnp.float32)
    b2_s = jnp.zeros((NUM_JOINTS,), jnp.float32)
    b2_q = jnp.zeros((q_out,), jnp.float32)

    # lane-dense combined first layer: (34, 128)
    w1 = jnp.concatenate([w1_s, w1_q], axis=1)
    b1 = jnp.zeros((1, H_COMB), jnp.float32)

    # planar reorder of the Q head columns: [root(3) | qw | qx | qy | qz]
    perm = np.concatenate([np.arange(3)]
                          + [3 + 4 * np.arange(NUM_JOINTS) + k for k in range(4)])
    w2_q_p = w2_q[:, perm]
    b2_q_p = b2_q[perm]

    # block-diagonal second layer padded to (128, 128); '+0.5' folded into bias
    w2 = jnp.zeros((H_COMB, H2_W), jnp.float32)
    w2 = w2.at[:HIDDEN, BL_OFF:BL_OFF + NUM_JOINTS].set(w2_s)
    w2 = w2.at[HIDDEN:, ROOT_OFF:ROOT_OFF + q_out].set(w2_q_p)
    b2 = jnp.zeros((1, H2_W), jnp.float32)
    b2 = b2.at[0, BL_OFF:BL_OFF + NUM_JOINTS].set(b2_s + 0.5)
    b2 = b2.at[0, ROOT_OFF:ROOT_OFF + q_out].set(b2_q_p)
    return dict(w1=w1, b1=b1, w2=w2, b2=b2)


# ----------------------------------------------------------------------------
# the single fused kernel (no closed-over array constants: everything is a ref)
# ----------------------------------------------------------------------------
def skel_kernel(x_ref, w1_ref, b1_ref, w2_ref, b2_ref, fkp_ref, consts_ref, o_ref):
    # ---- fused encoder_S + encoder_Q : one lane-dense 2-layer MLP (MXU) ----
    h1 = jnp.dot(x_ref[...], w1_ref[...], preferred_element_type=jnp.float32)
    h1 = jnp.maximum(h1 + b1_ref[...], 0.0)                              # (TB, 128)
    h2 = jnp.dot(h1, w2_ref[...], preferred_element_type=jnp.float32) + b2_ref[...]

    consts = consts_ref[...]
    dx = consts[0:1, 0:NUM_JOINTS]
    dy = consts[1:2, 0:NUM_JOINTS]
    dz = consts[2:3, 0:NUM_JOINTS]
    cb = consts[3:4, :]                                                  # (1, 128)

    # planar layout: [bone_len(+0.5) | root | qw | qx | qy | qz | pad]
    blen = h2[:, BL_OFF:BL_OFF + NUM_JOINTS]
    root = h2[:, ROOT_OFF:ROOT_OFF + 3]
    qw = h2[:, QW_OFF:QW_OFF + NUM_JOINTS]
    qx = h2[:, QX_OFF:QX_OFF + NUM_JOINTS]
    qy = h2[:, QY_OFF:QY_OFF + NUM_JOINTS]
    qz = h2[:, QZ_OFF:QZ_OFF + NUM_JOINTS]

    # ---- quaternion normalize + rotate canonical bone vectors (VPU/EUP, f32) ----
    inv_n = lax.rsqrt(qw * qw + qx * qx + qy * qy + qz * qz + 1e-8)
    qw = qw * inv_n; qx = qx * inv_n; qy = qy * inv_n; qz = qz * inv_n
    vx = blen * dx; vy = blen * dy; vz = blen * dz
    tx = 2.0 * (qy * vz - qz * vy)
    ty = 2.0 * (qz * vx - qx * vz)
    tz = 2.0 * (qx * vy - qy * vx)
    rx = vx + qw * tx + (qy * tz - qz * ty)
    ry = vy + qw * ty + (qz * tx - qx * tz)
    rz = vz + qw * tz + (qx * ty - qy * tx)

    # ---- FK tree accumulation + camera/projection: ONE lane-dense matmul ----
    r_ext = jnp.concatenate([rx, ry, rz, root], axis=1)                  # (TB, 57)
    p = jnp.dot(r_ext, fkp_ref[...], preferred_element_type=jnp.float32) + cb

    # perspective divide on the interleaved (u,v) lanes; EUP slot, f32 math
    inv_cw = pl.reciprocal(p[:, CW_OFF:CW_OFF + 34] + 1e-9, approx=True)
    uv = p[:, UV_OFF:UV_OFF + 34] * inv_cw

    # single full-width 128-lane store of the packed result (bf16 slab)
    o_ref[...] = jnp.concatenate([uv, p[:, POS_OFF:]], axis=1).astype(o_ref.dtype)


def _pick_tile_b(B, max_tile=4096):
    """Largest tile that (a) divides B, (b) is a multiple of 8, (c) leaves the
    grid with >= 2 steps when possible (v7x megacore), (d) is <= max_tile."""
    if B <= 8:
        return B
    half = max(8, ((B // 2) // 8) * 8)
    t = min(max_tile, half)
    t -= t % 8
    while t >= 8:
        if B % t == 0:
            return t
        t -= 8
    return B


def make_skel_net(fkp, consts):
    fkp = jnp.asarray(fkp, jnp.float32)
    consts = jnp.asarray(consts, jnp.float32)
    weight_bytes = 4 * (IN_DIM * H_COMB + H_COMB + H_COMB * H2_W + H2_W
                        + 57 * OUT_W + 4 * OUT_W)

    def forward(params, x, *, tile_b=None):
        B = x.shape[0]
        tb = tile_b if tile_b is not None else _pick_tile_b(B)
        assert B % tb == 0 and (tb == B or tb % 8 == 0)

        # double-buffered I/O tiles + f32 intermediates + resident weights + slack
        vmem_est = (2 * tb * (IN_DIM * 4 + OUT_W * 2)
                    + 14 * tb * OUT_W * 4 + 2 * weight_bytes + (2 << 20))
        vmem_limit = int(min(max(vmem_est, 32 << 20), 56 << 20))

        cost = pl.CostEstimate(
            flops=int(B * (2 * IN_DIM * H_COMB + 2 * H_COMB * H2_W
                           + 2 * 57 * OUT_W + 40 * NUM_JOINTS)),
            transcendentals=int(B * (NUM_JOINTS + 34)),
            bytes_accessed=int(B * (IN_DIM * 4 + OUT_W * 2) + weight_bytes),
        )

        resident = lambda shape: pl.BlockSpec(shape, lambda i: (0, 0))
        out = pl.pallas_call(
            skel_kernel,
            out_shape=jax.ShapeDtypeStruct((B, OUT_W), jnp.bfloat16),
            grid=(B // tb,),
            in_specs=[
                pl.BlockSpec((tb, IN_DIM), lambda i: (i, 0)),   # batch-tiled input
                resident((IN_DIM, H_COMB)),                     # weights VMEM-resident
                resident((1, H_COMB)),
                resident((H_COMB, H2_W)),
                resident((1, H2_W)),
                resident((57, OUT_W)),
                resident((4, OUT_W)),
            ],
            out_specs=pl.BlockSpec((tb, OUT_W), lambda i: (i, 0)),
            compiler_params=pltpu.CompilerParams(
                dimension_semantics=("parallel",),              # v7x: shard batch over 2 TCs
                vmem_limit_bytes=vmem_limit,
            ),
            cost_estimate=cost,
        )(x, params["w1"], params["b1"], params["w2"], params["b2"], fkp, consts)

        # joint-drop + u/v interleave are baked into the slab layout:
        # the wrapper is just two contiguous slices (+ cast back to f32).
        pose_2d = out[:, UV_OFF:UV_OFF + 34].astype(jnp.float32)
        fake_position_result = (out[:, POS_OFF:POS_OFF + 3 * NUM_POSITIONS]
                                .astype(jnp.float32)
                                .reshape(B, NUM_POSITIONS, 3))
        return pose_2d, fake_position_result

    return forward


# ----------------------------------------------------------------------------
# pure-JAX reference (for the in-script sanity check)
# ----------------------------------------------------------------------------
def _reference_forward(params, x, M, A, dirs):
    B = x.shape[0]
    h1 = jnp.maximum(x @ params["w1"] + params["b1"], 0.0)
    h2 = h1 @ params["w2"] + params["b2"]
    blen = h2[:, BL_OFF:BL_OFF + NUM_JOINTS]
    root = h2[:, ROOT_OFF:ROOT_OFF + 3]
    qw = h2[:, QW_OFF:QW_OFF + NUM_JOINTS]
    qx = h2[:, QX_OFF:QX_OFF + NUM_JOINTS]
    qy = h2[:, QY_OFF:QY_OFF + NUM_JOINTS]
    qz = h2[:, QZ_OFF:QZ_OFF + NUM_JOINTS]
    inv_n = lax.rsqrt(qw * qw + qx * qx + qy * qy + qz * qz + 1e-8)
    qw, qx, qy, qz = qw * inv_n, qx * inv_n, qy * inv_n, qz * inv_n
    vx = blen * dirs[0:1]; vy = blen * dirs[1:2]; vz = blen * dirs[2:3]
    tx = 2.0 * (qy * vz - qz * vy); ty = 2.0 * (qz * vx - qx * vz); tz = 2.0 * (qx * vy - qy * vx)
    rx = vx + qw * tx + (qy * tz - qz * ty)
    ry = vy + qw * ty + (qz * tx - qx * tz)
    rz = vz + qw * tz + (qx * ty - qy * tx)
    At = jnp.asarray(A.T)
    px = rx @ At + root[:, 0:1]
    py = ry @ At + root[:, 1:2]
    pz = rz @ At + root[:, 2:3]
    c = 1.0 / (1.0 + 1e-9)
    fake_pos = jnp.stack([px * c, py * c, pz * c], axis=-1)
    row = lambda i: (px * float(M[i, 0]) + py * float(M[i, 1])
                     + pz * float(M[i, 2]) + float(M[i, 3]))
    cx, cy, cw = row(0), row(1), row(3)
    u = cx / (cw + 1e-9); v = cy / (cw + 1e-9)
    p2 = jnp.stack([u, v], axis=-1)
    pose_2d = jnp.concatenate([p2[:, :9], p2[:, 11:]], axis=1).reshape(B, 34)
    return pose_2d, fake_pos


if __name__ == "__main__":
    M, A, dirs, fkp, consts = build_constants()
    forward = make_skel_net(fkp, consts)
    params = init_params(jax.random.PRNGKey(42))

    B = 16
    x = jax.random.normal(jax.random.PRNGKey(0), (B, IN_DIM), dtype=jnp.float32)

    # default tile picker -> tb=8, a 2-step "parallel" batch grid
    fwd = jax.jit(lambda p, xx: forward(p, xx))
    pose_2d, fake_pos = fwd(params, x)
    jax.block_until_ready((pose_2d, fake_pos))

    assert pose_2d.shape == (B, 34) and fake_pos.shape == (B, NUM_POSITIONS, 3)

    # loose sanity check vs pure-JAX reference (MXU precision, approx reciprocal
    # and the bf16 output slab make the kernel slightly non-bit-exact).
    ref_pose, ref_pos = _reference_forward(params, x, M, A, dirs)
    np.testing.assert_allclose(np.asarray(fake_pos), np.asarray(ref_pos),
                               rtol=5e-2, atol=5e-2)
    np.testing.assert_allclose(np.asarray(pose_2d), np.asarray(ref_pose),
                               rtol=5e-2, atol=5e-2)

    print("KERNEL_OK")
</pallas_src>

<mosaic_0001>
module attributes {stable_mosaic.version = 11 : i64} {
  func.func @skel_kernel(%arg0: i32, %arg1: memref<8x34xf32, #tpu.memory_space<vmem>>, %arg2: memref<34x128xf32, #tpu.memory_space<vmem>>, %arg3: memref<1x128xf32, #tpu.memory_space<vmem>>, %arg4: memref<128x128xf32, #tpu.memory_space<vmem>>, %arg5: memref<1x128xf32, #tpu.memory_space<vmem>>, %arg6: memref<57x128xf32, #tpu.memory_space<vmem>>, %arg7: memref<4x128xf32, #tpu.memory_space<vmem>>, %arg8: memref<8x128xbf16, #tpu.memory_space<vmem>>) attributes {dimension_semantics = [#tpu.dimension_semantics<parallel>], iteration_bounds = array<i64: 2>, scalar_prefetch = 0 : i64, scratch_operands = 0 : i64, tpu.core_type = #tpu.core_type<tc>, window_params = [{transform_indices = @transform_0, window_bounds = array<i64: 8, 34>}, {pipeline_mode = #tpu.pipeline_mode<synchronous>, transform_indices = @transform_1, window_bounds = array<i64: 34, 128>}, {pipeline_mode = #tpu.pipeline_mode<synchronous>, transform_indices = @transform_2, window_bounds = array<i64: 1, 128>}, {pipeline_mode = #tpu.pipeline_mode<synchronous>, transform_indices = @transform_3, window_bounds = array<i64: 128, 128>}, {pipeline_mode = #tpu.pipeline_mode<synchronous>, transform_indices = @transform_4, window_bounds = array<i64: 1, 128>}, {pipeline_mode = #tpu.pipeline_mode<synchronous>, transform_indices = @transform_5, window_bounds = array<i64: 57, 128>}, {pipeline_mode = #tpu.pipeline_mode<synchronous>, transform_indices = @transform_6, window_bounds = array<i64: 4, 128>}, {transform_indices = @transform_7, window_bounds = array<i64: 8, 128>}]} {
    %c0 = arith.constant 0 : index
    %c0_0 = arith.constant 0 : index
    %0 = vector.load %arg1[%c0, %c0_0] : memref<8x34xf32, #tpu.memory_space<vmem>>, vector<8x34xf32>
    %c0_1 = arith.constant 0 : index
    %c0_2 = arith.constant 0 : index
    %1 = vector.load %arg2[%c0_1, %c0_2] : memref<34x128xf32, #tpu.memory_space<vmem>>, vector<34x128xf32>
    %cst = arith.constant dense<0.000000e+00> : vector<8x128xf32>
    %2 = tpu.matmul %0, %1, %cst {dimension_numbers = #tpu.dot_dimension_numbers<[1], [0], [0], [1], [0, 0, 1, 1], [], []>} : vector<8x34xf32>, vector<34x128xf32>, vector<8x128xf32> -> vector<8x128xf32>
    %c0_3 = arith.constant 0 : index
    %c0_4 = arith.constant 0 : index
    %3 = vector.load %arg3[%c0_3, %c0_4] : memref<1x128xf32, #tpu.memory_space<vmem>>, vector<1x128xf32>
    %4 = vector.broadcast %3 : vector<1x128xf32> to vector<8x128xf32>
    %5 = arith.addf %2, %4 : vector<8x128xf32>
    %cst_5 = arith.constant 0.000000e+00 : f32
    %6 = vector.broadcast %cst_5 : f32 to vector<8x128xf32>
    %7 = arith.maximumf %5, %6 : vector<8x128xf32>
    %c0_6 = arith.constant 0 : index
    %c0_7 = arith.constant 0 : index
    %8 = vector.load %arg4[%c0_6, %c0_7] : memref<128x128xf32, #tpu.memory_space<vmem>>, vector<128x128xf32>
    %cst_8 = arith.constant dense<0.000000e+00> : vector<8x128xf32>
    %9 = tpu.matmul %7, %8, %cst_8 {dimension_numbers = #tpu.dot_dimension_numbers<[1], [0], [0], [1], [0, 0, 1, 1], [], []>} : vector<8x128xf32>, vector<128x128xf32>, vector<8x128xf32> -> vector<8x128xf32>
    %c0_9 = arith.constant 0 : index
    %c0_10 = arith.constant 0 : index
    %10 = vector.load %arg5[%c0_9, %c0_10] : memref<1x128xf32, #tpu.memory_space<vmem>>, vector<1x128xf32>
    %11 = vector.broadcast %10 : vector<1x128xf32> to vector<8x128xf32>
    %12 = arith.addf %9, %11 : vector<8x128xf32>
    %c0_11 = arith.constant 0 : index
    %c0_12 = arith.constant 0 : index
    %13 = vector.load %arg7[%c0_11, %c0_12] : memref<4x128xf32, #tpu.memory_space<vmem>>, vector<4x128xf32>
    %14 = vector.extract_strided_slice %13 {offsets = [0, 0], sizes = [1, 18], strides = [1, 1]} : vector<4x128xf32> to vector<1x18xf32>
    %15 = vector.extract_strided_slice %13 {offsets = [1, 0], sizes = [1, 18], strides = [1, 1]} : vector<4x128xf32> to vector<1x18xf32>
    %16 = vector.extract_strided_slice %13 {offsets = [2, 0], sizes = [1, 18], strides = [1, 1]} : vector<4x128xf32> to vector<1x18xf32>
    %17 = vector.extract_strided_slice %13 {offsets = [3, 0], sizes = [1, 128], strides = [1, 1]} : vector<4x128xf32> to vector<1x128xf32>
    %18 = vector.extract_strided_slice %12 {offsets = [0, 0], sizes = [8, 18], strides = [1, 1]} : vector<8x128xf32> to vector<8x18xf32>
    %19 = vector.extract_strided_slice %12 {offsets = [0, 18], sizes = [8, 3], strides = [1, 1]} : vector<8x128xf32> to vector<8x3xf32>
    %20 = vector.extract_strided_slice %12 {offsets = [0, 21], sizes = [8, 18], strides = [1, 1]} : vector<8x128xf32> to vector<8x18xf32>
    %21 = vector.extract_strided_slice %12 {offsets = [0, 39], sizes = [8, 18], strides = [1, 1]} : vector<8x128xf32> to vector<8x18xf32>
    %22 = vector.extract_strided_slice %12 {offsets = [0, 57], sizes = [8, 18], strides = [1, 1]} : vector<8x128xf32> to vector<8x18xf32>
    %23 = vector.extract_strided_slice %12 {offsets = [0, 75], sizes = [8, 18], strides = [1, 1]} : vector<8x128xf32> to vector<8x18xf32>
    %24 = arith.mulf %20, %20 : vector<8x18xf32>
    %25 = arith.mulf %21, %21 : vector<8x18xf32>
    %26 = arith.addf %24, %25 : vector<8x18xf32>
    %27 = arith.mulf %22, %22 : vector<8x18xf32>
    %28 = arith.addf %26, %27 : vector<8x18xf32>
    %29 = arith.mulf %23, %23 : vector<8x18xf32>
    %30 = arith.addf %28, %29 : vector<8x18xf32>
    %cst_13 = arith.constant 9.99999993E-9 : f32
    %31 = vector.broadcast %cst_13 : f32 to vector<8x18xf32>
    %32 = arith.addf %30, %31 : vector<8x18xf32>
    %33 = math.rsqrt %32 : vector<8x18xf32>
    %34 = arith.mulf %20, %33 : vector<8x18xf32>
    %35 = arith.mulf %21, %33 : vector<8x18xf32>
    %36 = arith.mulf %22, %33 : vector<8x18xf32>
    %37 = arith.mulf %23, %33 : vector<8x18xf32>
    %38 = vector.broadcast %14 : vector<1x18xf32> to vector<8x18xf32>
    %39 = arith.mulf %18, %38 : vector<8x18xf32>
    %40 = vector.broadcast %15 : vector<1x18xf32> to vector<8x18xf32>
    %41 = arith.mulf %18, %40 : vector<8x18xf32>
    %42 = vector.broadcast %16 : vector<1x18xf32> to vector<8x18xf32>
    %43 = arith.mulf %18, %42 : vector<8x18xf32>
    %44 = arith.mulf %36, %43 : vector<8x18xf32>
    %45 = arith.mulf %37, %41 : vector<8x18xf32>
    %46 = arith.subf %44, %45 : vector<8x18xf32>
    %cst_14 = arith.constant 2.000000e+00 : f32
    %47 = vector.broadcast %cst_14 : f32 to vector<8x18xf32>
    %48 = arith.mulf %47, %46 : vector<8x18xf32>
    %49 = arith.mulf %37, %39 : vector<8x18xf32>
    %50 = arith.mulf %35, %43 : vector<8x18xf32>
    %51 = arith.subf %49, %50 : vector<8x18xf32>
    %cst_15 = arith.constant 2.000000e+00 : f32
    %52 = vector.broadcast %cst_15 : f32 to vector<8x18xf32>
    %53 = arith.mulf %52, %51 : vector<8x18xf32>
    %54 = arith.mulf %35, %41 : vector<8x18xf32>
    %55 = arith.mulf %36, %39 : vector<8x18xf32>
    %56 = arith.subf %54, %55 : vector<8x18xf32>
    %cst_16 = arith.constant 2.000000e+00 : f32
    %57 = vector.broadcast %cst_16 : f32 to vector<8x18xf32>
    %58 = arith.mulf %57, %56 : vector<8x18xf32>
    %59 = arith.mulf %34, %48 : vector<8x18xf32>
    %60 = arith.addf %39, %59 : vector<8x18xf32>
    %61 = arith.mulf %36, %58 : vector<8x18xf32>
    %62 = arith.mulf %37, %53 : vector<8x18xf32>
    %63 = arith.subf %61, %62 : vector<8x18xf32>
    %64 = arith.addf %60, %63 : vector<8x18xf32>
    %65 = arith.mulf %34, %53 : vector<8x18xf32>
    %66 = arith.addf %41, %65 : vector<8x18xf32>
    %67 = arith.mulf %37, %48 : vector<8x18xf32>
    %68 = arith.mulf %35, %58 : vector<8x18xf32>
    %69 = arith.subf %67, %68 : vector<8x18xf32>
    %70 = arith.addf %66, %69 : vector<8x18xf32>
    %71 = arith.mulf %34, %58 : vector<8x18xf32>
    %72 = arith.addf %43, %71 : vector<8x18xf32>
    %73 = arith.mulf %35, %53 : vector<8x18xf32>
    %74 = arith.mulf %36, %48 : vector<8x18xf32>
    %75 = arith.subf %73, %74 : vector<8x18xf32>
    %76 = arith.addf %72, %75 : vector<8x18xf32>
    %77 = tpu.concatenate %64, %70, %76, %19 in 1 : vector<8x18xf32>, vector<8x18xf32>, vector<8x18xf32>, vector<8x3xf32> -> vector<8x57xf32>
    %c0_17 = arith.constant 0 : index
    %c0_18 = arith.constant 0 : index
    %78 = vector.load %arg6[%c0_17, %c0_18] : memref<57x128xf32, #tpu.memory_space<vmem>>, vector<57x128xf32>
    %cst_19 = arith.constant dense<0.000000e+00> : vector<8x128xf32>
    %79 = tpu.matmul %77, %78, %cst_19 {dimension_numbers = #tpu.dot_dimension_numbers<[1], [0], [0], [1], [0, 0, 1, 1], [], []>} : vector<8x57xf32>, vector<57x128xf32>, vector<8x128xf32> -> vector<8x128xf32>
    %80 = vector.broadcast %17 : vector<1x128xf32> to vector<8x128xf32>
    %81 = arith.addf %79, %80 : vector<8x128xf32>
    %82 = vector.extract_strided_slice %81 {offsets = [0, 91], sizes = [8, 34], strides = [1, 1]} : vector<8x128xf32> to vector<8x34xf32>
    %cst_20 = arith.constant 9.99999971E-10 : f32
    %83 = vector.broadcast %cst_20 : f32 to vector<8x34xf32>
    %84 = arith.addf %82, %83 : vector<8x34xf32>
    %85 = tpu.reciprocal %84 {approx = true} : vector<8x34xf32> -> vector<8x34xf32>
    %86 = vector.extract_strided_slice %81 {offsets = [0, 0], sizes = [8, 34], strides = [1, 1]} : vector<8x128xf32> to vector<8x34xf32>
    %87 = arith.mulf %86, %85 : vector<8x34xf32>
    %88 = vector.extract_strided_slice %81 {offsets = [0, 34], sizes = [8, 94], strides = [1, 1]} : vector<8x128xf32> to vector<8x94xf32>
    %89 = tpu.concatenate %87, %88 in 1 : vector<8x34xf32>, vector<8x94xf32> -> vector<8x128xf32>
    %90 = arith.truncf %89 : vector<8x128xf32> to vector<8x128xbf16>
    %c0_21 = arith.constant 0 : index
    %c0_22 = arith.constant 0 : index
    %91 = vector.load %arg8[%c0_21, %c0_22] : memref<8x128xbf16, #tpu.memory_space<vmem>>, vector<8x128xbf16>
    tpu.vector_store %arg8[%c0_21, %c0_22], %90 {strides = array<i32>} : memref<8x128xbf16, #tpu.memory_space<vmem>>, vector<8x128xbf16>,
    return
  }
  func.func @transform_0(%arg0: i32) -> (i32, i32) {
    %c0_i32 = arith.constant 0 : i32
    %c0_i32_0 = arith.constant 0 : i32
    return %arg0, %c0_i32 : i32, i32
  }
  func.func @transform_1(%arg0: i32) -> (i32, i32) {
    %c0_i32 = arith.constant 0 : i32
    %c0_i32_0 = arith.constant 0 : i32
    %c0_i32_1 = arith.constant 0 : i32
    return %c0_i32, %c0_i32_0 : i32, i32
  }
  func.func @transform_2(%arg0: i32) -> (i32, i32) {
    %c0_i32 = arith.constant 0 : i32
    %c0_i32_0 = arith.constant 0 : i32
    %c0_i32_1 = arith.constant 0 : i32
    return %c0_i32, %c0_i32_0 : i32, i32
  }
  func.func @transform_3(%arg0: i32) -> (i32, i32) {
    %c0_i32 = arith.constant 0 : i32
    %c0_i32_0 = arith.constant 0 : i32
    %c0_i32_1 = arith.constant 0 : i32
    return %c0_i32, %c0_i32_0 : i32, i32
  }
  func.func @transform_4(%arg0: i32) -> (i32, i32) {
    %c0_i32 = arith.constant 0 : i32
    %c0_i32_0 = arith.constant 0 : i32
    %c0_i32_1 = arith.constant 0 : i32
    return %c0_i32, %c0_i32_0 : i32, i32
  }
  func.func @transform_5(%arg0: i32) -> (i32, i32) {
    %c0_i32 = arith.constant 0 : i32
    %c0_i32_0 = arith.constant 0 : i32
    %c0_i32_1 = arith.constant 0 : i32
    return %c0_i32, %c0_i32_0 : i32, i32
  }
  func.func @transform_6(%arg0: i32) -> (i32, i32) {
    %c0_i32 = arith.constant 0 : i32
    %c0_i32_0 = arith.constant 0 : i32
    %c0_i32_1 = arith.constant 0 : i32
    return %c0_i32, %c0_i32_0 : i32, i32
  }
  func.func @transform_7(%arg0: i32) -> (i32, i32) {
    %c0_i32 = arith.constant 0 : i32
    %c0_i32_0 = arith.constant 0 : i32
    return %arg0, %c0_i32 : i32, i32
  }
}

</mosaic_0001>

<llo_original>
// kernel: _lambda_.1
$region0: #{_lambda_.1}
  #allocation0 [shape = 'u32[]', space=smem, size = 0x4, offset = 0x4, fixed_abs, tag = 'smem constant byte address 0x4 - core index']
  #allocation1 [shape = 'u32[144,128]{1,0:T(1,128)}', space=vmem, size = 0x12000, scoped, tag = 'internal scratch']
  %s0 = inlined_call_operand.hbm [shape: f32[16,34], index: 0, kind: input, shape index: {}]
  %s1 = inlined_call_operand.hbm [shape: f32[34,128], index: 1, kind: input, shape index: {}]
  %s2 = inlined_call_operand.vmem [shape: f32[1,128], index: 2, kind: input, shape index: {}]
  %s3 = inlined_call_operand.hbm [shape: f32[128,128], index: 3, kind: input, shape index: {}]
  %s4 = inlined_call_operand.vmem [shape: f32[1,128], index: 4, kind: input, shape index: {}]
  %s5 = inlined_call_operand.hbm [shape: f32[57,128], index: 5, kind: input, shape index: {}]
  %s6 = inlined_call_operand.vmem [shape: f32[4,128], index: 6, kind: input, shape index: {}]
  %s7 = inlined_call_operand.vmem [shape: bf16[16,128], index: 7, kind: output, shape index: {}]
  %s8 = sld [smem:[#allocation0]]
  $region77: #{_lambda_.1} parent=0
    _
  %s10 = ssub.s32 1, %s8
  %s11 = scalar_select 0, %s10, %s8
  $region1: #{_lambda_.1} parent=0
    #allocation2 [shape = 'u8[8192]{0}', space=vmem, size = 0x2000, scoped, tag = 'input window, operand 0']
    #allocation3 [shape = 's32[2]{0}', space=sflag, size = 0x8, scoped, tag = 'scoped memory for _lambda_.1']
    #allocation4 [shape = 'u8[20480]{0}', space=vmem, size = 0x5000, scoped, tag = 'input window, operand 1, single buffered']
    #allocation5 [shape = 's32[1]{0}', space=sflag, size = 0x4, scoped, tag = 'scoped memory for _lambda_.1']
    #allocation6 [shape = 'u8[65536]{0}', space=vmem, size = 0x10000, scoped, tag = 'input window, operand 3, single buffered']
    #allocation7 [shape = 'u8[32768]{0}', space=vmem, size = 0x8000, scoped, tag = 'input window, operand 5, single buffered']
    #allocation8 [shape = 's32[1]{0}', space=sflag, size = 0x4, scoped, tag = 'scoped memory for _lambda_.1']
    %12 = vsyncpa [#allocation3], 0
    %s13 = scalar_lea.sflag [#allocation3], 1
    %14 = vsyncpa %s13, 0
    %15 = vsyncpa [#allocation5], 0
    %16 = vsyncpa [#allocation8], 0
    loop: start=0, step=1, limit=4
    $region2: #{_lambda_.1} parent=1 // loop_pre_header
      _
    $region3: #{_lambda_.1} parent=1 // loop_header
      %s18 = sphi 0, %s22
      %p19 = scmp.ge.s32.totalorder %s18, 4
      %s28 = sphi 0, %s30
      %s31 = sphi 0, %s28
      %s32 = sphi 0, %s31
      %s48 = sphi 0, %s32
      %s52 = sphi 0, %s52
      %s54 = sphi 0, %s52
      %s55 = sphi 0, %s54
      %s69 = sphi 0, %s55
      %s73 = sphi 0, %s73
      %s75 = sphi 0, %s73
      %s76 = sphi 0, %s75
      %s90 = sphi 0, %s76
      %s94 = sphi 0, %s94
      %s96 = sphi 0, %s94
      %s97 = sphi 0, %s96
      %s111 = sphi 0, %s97
      %s115 = sphi 0, %s115
      %s117 = sphi 0, %s115
      %s118 = sphi 0, %s117
      %s132 = sphi 0, %s118
      %s136 = sphi 0, %s136
      %s138 = sphi 0, %s136
      %s139 = sphi 0, %s138
      %s153 = sphi 0, %s139
      %s157 = sphi 0, %s157
      %s159 = sphi 0, %s157
      %s160 = sphi 0, %s159
      %s174 = sphi 0, %s160
      %s180 = sphi 0, %s182
      %s183 = sphi 0, %s180
      %s184 = sphi 0, %s183
      %s200 = sphi 0, %s184
    $region4: #{_lambda_.1} parent=1 // loop_header_branch
      %21 = sbr.rel (%p19) target = $region8
    $region5: #{_lambda_.1} parent=1 // loop_body
      %s23 = ssub.s32 %s18, 1
      %s24 = ssub.s32 %s18, 2
      %s25 = sadd.s32 %s18, 1
      %s26 = ssub.s32 %s18, %s25
      %p27 = scmp.eq.s32.totalorder %s26, 0
      %s29 = sadd.s32 %s28, 1
      %s30 = scalar_select %p27, %s28, %s29
      %p33 = pneg %p27
      %p34 = scmp.eq.s32.totalorder %s18, 1
      %p35 = por %p33, %p34
      %p36 = scmp.ne.s32.totalorder %s28, %s31
      %p37 = scmp.eq.s32.totalorder %s18, 0
      %p38 = por %p36, %p37
      %p39 = scmp.ne.s32.totalorder %s28, %s31
      %p40 = scmp.eq.s32.totalorder %s23, 1
      %p41 = por %p39, %p40
      %p42 = scmp.ne.s32.totalorder %s31, %s32
      %p43 = scmp.eq.s32.totalorder %s23, 0
      %p44 = por %p42, %p43
      %p45 = scmp.ne.s32.totalorder %s31, %s32
      %p46 = scmp.eq.s32.totalorder %s24, 1
      %p47 = por %p45, %p46
      %p49 = scmp.ne.s32.totalorder %s32, %s48
      %p50 = scmp.eq.s32.totalorder %s24, 0
      %p51 = por %p49, %p50
      %s53 = sadd.s32 %s52, 1
      %p56 = scmp.eq.s32.totalorder %s18, 1
      %p57 = scmp.ne.s32.totalorder %s52, %s54
      %p58 = scmp.eq.s32.totalorder %s18, 0
      %p59 = por %p57, %p58
      %p60 = scmp.ne.s32.totalorder %s52, %s54
      %p61 = scmp.eq.s32.totalorder %s23, 1
      %p62 = por %p60, %p61
      %p63 = scmp.ne.s32.totalorder %s54, %s55
      %p64 = scmp.eq.s32.totalorder %s23, 0
      %p65 = por %p63, %p64
      %p66 = scmp.ne.s32.totalorder %s54, %s55
      %p67 = scmp.eq.s32.totalorder %s24, 1
      %p68 = por %p66, %p67
      %p70 = scmp.ne.s32.totalorder %s55, %s69
      %p71 = scmp.eq.s32.totalorder %s24, 0
      %p72 = por %p70, %p71
      %s74 = sadd.s32 %s73, 1
      %p77 = scmp.eq.s32.totalorder %s18, 1
      %p78 = scmp.ne.s32.totalorder %s73, %s75
      %p79 = scmp.eq.s32.totalorder %s18, 0
      %p80 = por %p78, %p79
      %p81 = scmp.ne.s32.totalorder %s73, %s75
      %p82 = scmp.eq.s32.totalorder %s23, 1
      %p83 = por %p81, %p82
      %p84 = scmp.ne.s32.totalorder %s75, %s76
      %p85 = scmp.eq.s32.totalorder %s23, 0
      %p86 = por %p84, %p85
      %p87 = scmp.ne.s32.totalorder %s75, %s76
      %p88 = scmp.eq.s32.totalorder %s24, 1
      %p89 = por %p87, %p88
      %p91 = scmp.ne.s32.totalorder %s76, %s90
      %p92 = scmp.eq.s32.totalorder %s24, 0
      %p93 = por %p91, %p92
      %s95 = sadd.s32 %s94, 1
      %p98 = scmp.eq.s32.totalorder %s18, 1
      %p99 = scmp.ne.s32.totalorder %s94, %s96
      %p100 = scmp.eq.s32.totalorder %s18, 0
      %p101 = por %p99, %p100
      %p102 = scmp.ne.s32.totalorder %s94, %s96
      %p103 = scmp.eq.s32.totalorder %s23, 1
      %p104 = por %p102, %p103
      %p105 = scmp.ne.s32.totalorder %s96, %s97
      %p106 = scmp.eq.s32.totalorder %s23, 0
      %p107 = por %p105, %p106
      %p108 = scmp.ne.s32.totalorder %s96, %s97
      %p109 = scmp.eq.s32.totalorder %s24, 1
      %p110 = por %p108, %p109
      %p112 = scmp.ne.s32.totalorder %s97, %s111
      %p113 = scmp.eq.s32.totalorder %s24, 0
      %p114 = por %p112, %p113
      %s116 = sadd.s32 %s115, 1
      %p119 = scmp.eq.s32.totalorder %s18, 1
      %p120 = scmp.ne.s32.totalorder %s115, %s117
      %p121 = scmp.eq.s32.totalorder %s18, 0
      %p122 = por %p120, %p121
      %p123 = scmp.ne.s32.totalorder %s115, %s117
      %p124 = scmp.eq.s32.totalorder %s23, 1
      %p125 = por %p123, %p124
      %p126 = scmp.ne.s32.totalorder %s117, %s118
      %p127 = scmp.eq.s32.totalorder %s23, 0
      %p128 = por %p126, %p127
      %p129 = scmp.ne.s32.totalorder %s117, %s118
      %p130 = scmp.eq.s32.totalorder %s24, 1
      %p131 = por %p129, %p130
      %p133 = scmp.ne.s32.totalorder %s118, %s132
      %p134 = scmp.eq.s32.totalorder %s24, 0
      %p135 = por %p133, %p134
      %s137 = sadd.s32 %s136, 1
      %p140 = scmp.eq.s32.totalorder %s18, 1
      %p141 = scmp.ne.s32.totalorder %s136, %s138
      %p142 = scmp.eq.s32.totalorder %s18, 0
      %p143 = por %p141, %p142
      %p144 = scmp.ne.s32.totalorder %s136, %s138
      %p145 = scmp.eq.s32.totalorder %s23, 1
      %p146 = por %p144, %p145
      %p147 = scmp.ne.s32.totalorder %s138, %s139
      %p148 = scmp.eq.s32.totalorder %s23, 0
      %p149 = por %p147, %p148
      %p150 = scmp.ne.s32.totalorder %s138, %s139
      %p151 = scmp.eq.s32.totalorder %s24, 1
      %p152 = por %p150, %p151
      %p154 = scmp.ne.s32.totalorder %s139, %s153
      %p155 = scmp.eq.s32.totalorder %s24, 0
      %p156 = por %p154, %p155
      %s158 = sadd.s32 %s157, 1
      %p161 = scmp.eq.s32.totalorder %s18, 1
      %p162 = scmp.ne.s32.totalorder %s157, %s159
      %p163 = scmp.eq.s32.totalorder %s18, 0
      %p164 = por %p162, %p163
      %p165 = scmp.ne.s32.totalorder %s157, %s159
      %p166 = scmp.eq.s32.totalorder %s23, 1
      %p167 = por %p165, %p166
      %p168 = scmp.ne.s32.totalorder %s159, %s160
      %p169 = scmp.eq.s32.totalorder %s23, 0
      %p170 = por %p168, %p169
      %p171 = scmp.ne.s32.totalorder %s159, %s160
      %p172 = scmp.eq.s32.totalorder %s24, 1
      %p173 = por %p171, %p172
      %p175 = scmp.ne.s32.totalorder %s160, %s174
      %p176 = scmp.eq.s32.totalorder %s24, 0
      %p177 = por %p175, %p176
      %s178 = ssub.s32 %s18, %s25
      %p179 = scmp.eq.s32.totalorder %s178, 0
      %s181 = sadd.s32 %s180, 1
      %s182 = scalar_select %p179, %s180, %s181
      %p185 = pneg %p179
      %p186 = scmp.eq.s32.totalorder %s18, 1
      %p187 = por %p185, %p186
      %p188 = scmp.ne.s32.totalorder %s180, %s183
      %p189 = scmp.eq.s32.totalorder %s18, 0
      %p190 = por %p188, %p189
      %p191 = scmp.ne.s32.totalorder %s180, %s183
      %p192 = scmp.eq.s32.totalorder %s23, 1
      %p193 = por %p191, %p192
      %p194 = scmp.ne.s32.totalorder %s183, %s184
      %p195 = scmp.eq.s32.totalorder %s23, 0
      %p196 = por %p194, %p195
      %p197 = scmp.ne.s32.totalorder %s183, %s184
      %p198 = scmp.eq.s32.totalorder %s24, 1
      %p199 = por %p197, %p198
      %p201 = scmp.ne.s32.totalorder %s184, %s200
      %p202 = scmp.eq.s32.totalorder %s24, 0
      %p203 = por %p201, %p202
      %p204 = scmp.le.s32.totalorder 1, %s18
      %p205 = scmp.lt.s32.totalorder %s18, 3
      %p206 = pnand %p204, %p205
      %p207 = pneg %p206
      // Predicated region
      $region9: #{_lambda_.1} parent=5 // pred_check
        _
      $region10: #{_lambda_.1} parent=5 // pred_check_branch
        %209 = sbr.rel (%p206) target = $region12
      $region11: #{_lambda_.1} parent=5 // pred_region
        %s210 = ssub.s32 %s18, 1
        // Predicated region
        $region13: #{_lambda_.1} parent=11 // pred_check
          %p211 = pneg %p65
        $region14: #{_lambda_.1} parent=11 // pred_check_branch
          %213 = sbr.rel (%p211) target = $region16
        $region15: #{_lambda_.1} parent=11 // pred_region
          %s215 = ssub.s32 640, 640
          %216 = vsyncadd [#allocation5], %s215
          %s217 = sshll.u32 [#allocation4], 4
          %s218 = int_to_ptr.vmem [resolvable:$true] %s217
          %223 = dma.hbm_to_vmem [thread:$0]  %s1, 640, %s218, [#allocation5], 128, 128, 8
        $region16: #{_lambda_.1} parent=11 // pred_fallthru
          _
        // Predicated region
        $region17: #{_lambda_.1} parent=11 // pred_check
          %p224 = pneg %p86
        $region18: #{_lambda_.1} parent=11 // pred_check_branch
          %226 = sbr.rel (%p224) target = $region20
        $region19: #{_lambda_.1} parent=11 // pred_region
          _
        $region20: #{_lambda_.1} parent=11 // pred_fallthru
          _
        // Predicated region
        $region21: #{_lambda_.1} parent=11 // pred_check
          %p227 = pneg %p107
        $region22: #{_lambda_.1} parent=11 // pred_check_branch
          %229 = sbr.rel (%p227) target = $region24
        $region23: #{_lambda_.1} parent=11 // pred_region
          %s231 = ssub.s32 2048, 2048
          %232 = vsyncadd [#allocation5], %s231
          %s233 = sshll.u32 [#allocation6], 4
          %s234 = int_to_ptr.vmem [resolvable:$true] %s233
          %239 = dma.hbm_to_vmem [thread:$0]  %s3, 2048, %s234, [#allocation5], 128, 128, 8
        $region24: #{_lambda_.1} parent=11 // pred_fallthru
          _
        // Predicated region
        $region25: #{_lambda_.1} parent=11 // pred_check
          %p240 = pneg %p128
        $region26: #{_lambda_.1} parent=11 // pred_check_branch
          %242 = sbr.rel (%p240) target = $region28
        $region27: #{_lambda_.1} parent=11 // pred_region
          _
        $region28: #{_lambda_.1} parent=11 // pred_fallthru
          _
        // Predicated region
        $region29: #{_lambda_.1} parent=11 // pred_check
          %p243 = pneg %p149
        $region30: #{_lambda_.1} parent=11 // pred_check_branch
          %245 = sbr.rel (%p243) target = $region32
        $region31: #{_lambda_.1} parent=11 // pred_region
          %s247 = ssub.s32 1024, 1024
          %248 = vsyncadd [#allocation8], %s247
          %s249 = sshll.u32 [#allocation7], 4
          %s250 = int_to_ptr.vmem [resolvable:$true] %s249
          %255 = dma.hbm_to_vmem [thread:$0]  %s5, 1024, %s250, [#allocation8], 128, 128, 8
        $region32: #{_lambda_.1} parent=11 // pred_fallthru
          _
        // Predicated region
        $region33: #{_lambda_.1} parent=11 // pred_check
          %p256 = pneg %p170
        $region34: #{_lambda_.1} parent=11 // pred_check_branch
          %258 = sbr.rel (%p256) target = $region36
        $region35: #{_lambda_.1} parent=11 // pred_region
          _
        $region36: #{_lambda_.1} parent=11 // pred_fallthru
          _
      $region12: #{_lambda_.1} parent=5 // pred_fallthru
        _
      %p259 = scmp.lt.s32.totalorder %s18, 2
      // Predicated region
      $region37: #{_lambda_.1} parent=5 // pred_check
        %p260 = pneg %p259
      $region38: #{_lambda_.1} parent=5 // pred_check_branch
        %262 = sbr.rel (%p260) target = $region40
      $region39: #{_lambda_.1} parent=5 // pred_region
        // Predicated region
        $region41: #{_lambda_.1} parent=39 // pred_check
          %p263 = pneg %p38
        $region42: #{_lambda_.1} parent=39 // pred_check_branch
          %265 = sbr.rel (%p263) target = $region44
        $region43: #{_lambda_.1} parent=39 // pred_region
          %s266 = sand.u32 %s28, 1
          %s267 = scalar_lea.sflag [#allocation3], %s266
          %s268 = sand.u32 %s28, 1
          %s269 = smul.addr %s268, 8
          %s270 = scalar_lea.vmem [#allocation2], %s269
          %s272 = ssub.s32 128, 128
          %273 = vsyncadd %s267, %s272
          %s274 = smul.addr %s18, 128
          %s275 = scalar_lea.hbm %s0, %s274
          %s277 = sshll.u32 %s270, 4
          %s278 = int_to_ptr.vmem [resolvable:$true] %s277
          %280 = dma.hbm_to_vmem [thread:$0]  %s275, 128, %s278, %s267
        $region44: #{_lambda_.1} parent=39 // pred_fallthru
          _
      $region40: #{_lambda_.1} parent=5 // pred_fallthru
        _
      %p281 = scmp.le.s32.totalorder 1, %s18
      %p282 = scmp.lt.s32.totalorder %s18, 3
      %p283 = pnand %p281, %p282
      %p284 = pneg %p283
      // Predicated region
      $region45: #{_lambda_.1} parent=5 // pred_check
        _
      $region46: #{_lambda_.1} parent=5 // pred_check_branch
        %286 = sbr.rel (%p283) target = $region48
      $region47: #{_lambda_.1} parent=5 // pred_region
        %s287 = ssub.s32 %s18, 1
        %s288 = sand.u32 %s31, 1
        %s289 = scalar_lea.sflag [#allocation3], %s288
        %s290 = sand.u32 %s31, 1
        %s291 = smul.addr %s290, 8
        %s292 = scalar_lea.vmem [#allocation2], %s291
        // Predicated region
        $region49: #{_lambda_.1} parent=47 // pred_check
          %p293 = pneg %p44
        $region50: #{_lambda_.1} parent=47 // pred_check_branch
          %295 = sbr.rel (%p293) target = $region52
        $region51: #{_lambda_.1} parent=47 // pred_region
          %296 = dma.done %s289, 128
        $region52: #{_lambda_.1} parent=47 // pred_fallthru
          _
        // Predicated region
        $region53: #{_lambda_.1} parent=47 // pred_check
          %p297 = pneg %p65
        $region54: #{_lambda_.1} parent=47 // pred_check_branch
          %299 = sbr.rel (%p297) target = $region56
        $region55: #{_lambda_.1} parent=47 // pred_region
          %300 = dma.done [#allocation5], 640
        $region56: #{_lambda_.1} parent=47 // pred_fallthru
          _
        // Predicated region
        $region57: #{_lambda_.1} parent=47 // pred_check
          %p301 = pneg %p107
        $region58: #{_lambda_.1} parent=47 // pred_check_branch
          %303 = sbr.rel (%p301) target = $region60
        $region59: #{_lambda_.1} parent=47 // pred_region
          %304 = dma.done [#allocation5], 2048
        $region60: #{_lambda_.1} parent=47 // pred_fallthru
          _
        // Predicated region
        $region61: #{_lambda_.1} parent=47 // pred_check
          %p305 = pneg %p149
        $region62: #{_lambda_.1} parent=47 // pred_check_branch
          %307 = sbr.rel (%p305) target = $region64
        $region63: #{_lambda_.1} parent=47 // pred_region
          %308 = dma.done [#allocation8], 1024
        $region64: #{_lambda_.1} parent=47 // pred_fallthru
          _
        %s309 = sand.u32 %s31, 1
        %s310 = scalar_lea.sflag [#allocation3], %s309
        %s311 = sand.u32 %s31, 1
        %s312 = smul.addr %s311, 8
        %s313 = scalar_lea.vmem [#allocation2], %s312
        %p314 = pneg %p44
        %p315 = pneg %p41
        %p316 = pneg %p65
        %p317 = pneg %p62
        %p318 = pneg %p86
        %p319 = pneg %p83
        %p320 = pneg %p107
        %p321 = pneg %p104
        %p322 = pneg %p128
        %p323 = pneg %p125
        %p324 = pneg %p149
        %p325 = pneg %p146
        %p326 = pneg %p170
        %p327 = pneg %p167
        %p328 = pneg %p196
        %p329 = pneg %p193
        %p330 = scmp.lt.s32.totalorder %s23, 1
        %s331 = scalar_select %p330, %s23, 1
        %s332 = smul.addr %s331, 4
        %s333 = scalar_lea.vmem %s7, %s332
        %p334 = scmp.lt.s32.totalorder %s23, 1
        %s335 = scalar_select %p334, %s23, 1
        %s336 = smul.addr %s335, 4
        %s337 = scalar_lea.vmem %s7, %s336
        %v338 = vld [vmem:[%s292] sm:$0xff]
        %v339 = vld [vmem:[#allocation4] sm:$0xff]
        %v340 = vld [vmem:[#allocation4 + $0x8] sm:$0xff]
        %v341 = vld [vmem:[#allocation4 + $0x10] sm:$0xff]
        %v342 = vld [vmem:[#allocation4 + $0x18] sm:$0xff]
        %v343 = vld [vmem:[#allocation4 + $0x20] sm:$0x3]
        %v344 = vld [vmem:[%s2] sm:$0x1]
        %v346 = vlaneseq
        %v347 = vshrl.u32 %v346, 7
        %v348 = vsub.s32 0, %v347
        %v349 = vrot.slane %v344, %v348
        %vm351 = vcmask 277504
        %v353 = vsel %vm351, %v338, 0
        %vm355 = vcmask 1041408
        %v357 = vsel %vm355, %v343, 0
        %359 = vmatprep.subr.mxu0 0.0
        %360 = vmatpush1.msra.mxu0 0.0
        %361 = vmatprep.subr.mxu0 0.0
        %362 = vmatpush1.msra.mxu0 0.0
        %363 = vmatprep.subr.mxu0 0.0
        %364 = vmatpush1.msra.mxu0 0.0
        %365 = vmatprep.subr.mxu0 0.0
        %366 = vmatpush1.msra.mxu0 0.0
        %367 = vmatprep.subr.mxu0 0.0
        %368 = vmatpush1.msra.mxu0 0.0
        %369 = vmatprep.subr.mxu0 0.0
        %370 = vmatpush1.msra.mxu0 0.0
        %371 = vmatprep.subr.mxu0 0.0
        %372 = vmatpush1.msra.mxu0 0.0
        %373 = vmatprep.subr.mxu0 0.0
        %374 = vmatpush1.msra.mxu0 0.0
        %375 = vmatprep.subr.mxu0 0.0
        %376 = vmatpush1.msra.mxu0 0.0
        %377 = vmatprep.subr.mxu0 0.0
        %378 = vmatpush1.msra.mxu0 0.0
        %379 = vmatprep.subr.mxu0 0.0
        %380 = vmatpush1.msra.mxu0 0.0
        %381 = vmatprep.subr.mxu0 0.0
        %382 = vmatpush1.msra.mxu0 %v357
        %383 = vmatprep.subr.mxu0 0.0
        %384 = vmatpush1.msra.mxu0 %v342
        %385 = vmatprep.subr.mxu0 0.0
        %386 = vmatpush1.msra.mxu0 %v341
        %387 = vmatprep.subr.mxu0 0.0
        %388 = vmatpush1.msra.mxu0 %v340
        %389 = vmatprep.subr.mxu0 0.0
        %390 = vmatpush1.msra.mxu0 %v339
        %391 = vmatprep.subr.mxu0 0.0
        %392 = vmatpush2.msra.mxu0 0.0
        %393 = vmatprep.subr.mxu0 0.0
        %394 = vmatpush2.msra.mxu0 0.0
        %395 = vmatprep.subr.mxu0 0.0
        %396 = vmatpush2.msra.mxu0 0.0
        %397 = vmatprep.subr.mxu0 0.0
        %398 = vmatpush2.msra.mxu0 0.0
        %399 = vmatprep.subr.mxu0 0.0
        %400 = vmatpush2.msra.mxu0 0.0
        %401 = vmatprep.subr.mxu0 0.0
        %402 = vmatpush2.msra.mxu0 0.0
        %403 = vmatprep.subr.mxu0 0.0
        %404 = vmatpush2.msra.mxu0 0.0
        %405 = vmatprep.subr.mxu0 0.0
        %406 = vmatpush2.msra.mxu0 0.0
        %407 = vmatprep.subr.mxu0 0.0
        %408 = vmatpush2.msra.mxu0 0.0
        %409 = vmatprep.subr.mxu0 0.0
        %410 = vmatpush2.msra.mxu0 0.0
        %411 = vmatprep.subr.mxu0 0.0
        %412 = vmatpush2.msra.mxu0 0.0
        %413 = vmatprep.subr.mxu0 0.0
        %414 = vmatpush2.msra.mxu0 0.0
        %415 = vmatprep.subr.mxu0 0.0
        %416 = vmatpush2.msra.mxu0 0.0
        %417 = vmatprep.subr.mxu0 0.0
        %418 = vmatpush2.msra.mxu0 0.0
        %419 = vmatprep.subr.mxu0 0.0
        %420 = vmatpush2.msra.mxu0 0.0
        %421 = vmatprep.subr.mxu0 0.0
        %422 = vmatpush2.msra.mxu0 0.0
        %423 = vmatprep.mubr.f32.mxu0 0.0
        %424 = vmatmul.mubr.f32.gmra.mxu0 %v353
        %v425 = vpop.f32.mrf.mxu0
        %v426 = vadd.f32 %v349, %v425
        %v427 = vpop.f32.mrf.mxu0
        %428 = vdwg.mxu0
        %v429 = vmax.f32 %v426, 0.0
        %v430 = vld [vmem:[#allocation6] sm:$0xff]
        %v431 = vld [vmem:[#allocation6 + $0x8] sm:$0xff]
        %v432 = vld [vmem:[#allocation6 + $0x10] sm:$0xff]
        %v433 = vld [vmem:[#allocation6 + $0x18] sm:$0xff]
        %v434 = vld [vmem:[#allocation6 + $0x20] sm:$0xff]
        %v435 = vld [vmem:[#allocation6 + $0x28] sm:$0xff]
        %v436 = vld [vmem:[#allocation6 + $0x30] sm:$0xff]
        %v437 = vld [vmem:[#allocation6 + $0x38] sm:$0xff]
        %v438 = vld [vmem:[#allocation6 + $0x40] sm:$0xff]
        %v439 = vld [vmem:[#allocation6 + $0x48] sm:$0xff]
        %v440 = vld [vmem:[#allocation6 + $0x50] sm:$0xff]
        %v441 = vld [vmem:[#allocation6 + $0x58] sm:$0xff]
        %v442 = vld [vmem:[#allocation6 + $0x60] sm:$0xff]
        %v443 = vld [vmem:[#allocation6 + $0x68] sm:$0xff]
        %v444 = vld [vmem:[#allocation6 + $0x70] sm:$0xff]
        %v445 = vld [vmem:[#allocation6 + $0x78] sm:$0xff]
        %v446 = vld [vmem:[%s4] sm:$0x1]
        %v448 = vlaneseq
        %v449 = vshrl.u32 %v448, 7
        %v450 = vsub.s32 0, %v449
        %v451 = vrot.slane %v446, %v450
        %453 = vmatprep.subr.mxu0 0.0
        %454 = vmatpush1.msra.mxu0 %v445
        %455 = vmatprep.subr.mxu0 0.0
        %456 = vmatpush1.msra.mxu0 %v444
        %457 = vmatprep.subr.mxu0 0.0
        %458 = vmatpush1.msra.mxu0 %v443
        %459 = vmatprep.subr.mxu0 0.0
        %460 = vmatpush1.msra.mxu0 %v442
        %461 = vmatprep.subr.mxu0 0.0
        %462 = vmatpush1.msra.mxu0 %v441
        %463 = vmatprep.subr.mxu0 0.0
        %464 = vmatpush1.msra.mxu0 %v440
        %465 = vmatprep.subr.mxu0 0.0
        %466 = vmatpush1.msra.mxu0 %v439
        %467 = vmatprep.subr.mxu0 0.0
        %468 = vmatpush1.msra.mxu0 %v438
        %469 = vmatprep.subr.mxu0 0.0
        %470 = vmatpush1.msra.mxu0 %v437
        %471 = vmatprep.subr.mxu0 0.0
        %472 = vmatpush1.msra.mxu0 %v436
        %473 = vmatprep.subr.mxu0 0.0
        %474 = vmatpush1.msra.mxu0 %v435
        %475 = vmatprep.subr.mxu0 0.0
        %476 = vmatpush1.msra.mxu0 %v434
        %477 = vmatprep.subr.mxu0 0.0
        %478 = vmatpush1.msra.mxu0 %v433
        %479 = vmatprep.subr.mxu0 0.0
        %480 = vmatpush1.msra.mxu0 %v432
        %481 = vmatprep.subr.mxu0 0.0
        %482 = vmatpush1.msra.mxu0 %v431
        %483 = vmatprep.subr.mxu0 0.0
        %484 = vmatpush1.msra.mxu0 %v430
        %485 = vmatprep.subr.mxu0 0.0
        %486 = vmatpush2.msra.mxu0 0.0
        %487 = vmatprep.subr.mxu0 0.0
        %488 = vmatpush2.msra.mxu0 0.0
        %489 = vmatprep.subr.mxu0 0.0
        %490 = vmatpush2.msra.mxu0 0.0
        %491 = vmatprep.subr.mxu0 0.0
        %492 = vmatpush2.msra.mxu0 0.0
        %493 = vmatprep.subr.mxu0 0.0
        %494 = vmatpush2.msra.mxu0 0.0
        %495 = vmatprep.subr.mxu0 0.0
        %496 = vmatpush2.msra.mxu0 0.0
        %497 = vmatprep.subr.mxu0 0.0
        %498 = vmatpush2.msra.mxu0 0.0
        %499 = vmatprep.subr.mxu0 0.0
        %500 = vmatpush2.msra.mxu0 0.0
        %501 = vmatprep.subr.mxu0 0.0
        %502 = vmatpush2.msra.mxu0 0.0
        %503 = vmatprep.subr.mxu0 0.0
        %504 = vmatpush2.msra.mxu0 0.0
        %505 = vmatprep.subr.mxu0 0.0
        %506 = vmatpush2.msra.mxu0 0.0
        %507 = vmatprep.subr.mxu0 0.0
        %508 = vmatpush2.msra.mxu0 0.0
        %509 = vmatprep.subr.mxu0 0.0
        %510 = vmatpush2.msra.mxu0 0.0
        %511 = vmatprep.subr.mxu0 0.0
        %512 = vmatpush2.msra.mxu0 0.0
        %513 = vmatprep.subr.mxu0 0.0
        %514 = vmatpush2.msra.mxu0 0.0
        %515 = vmatprep.subr.mxu0 0.0
        %516 = vmatpush2.msra.mxu0 0.0
        %517 = vmatprep.mubr.f32.mxu0 0.0
        %518 = vmatmul.mubr.f32.gmra.mxu0 %v429
        %v519 = vpop.f32.mrf.mxu0
        %v520 = vadd.f32 %v451, %v519
        %v521 = vpop.f32.mrf.mxu0
        %522 = vdwg.mxu0
        %v523 = vld [vmem:[%s6] sm:$0xf]
        %v524 = vmul.f32 %v520, %v520
        %526 = vrot.lane.b32.xlu0 %v524, 110
        %v527 = vpop.permute.xlu0 %526
        %v529 = vadd.f32 %v524, %v527
        %530 = vrot.lane.b32.xlu0 %v524, 92
        %v531 = vpop.permute.xlu0 %530
        %v533 = vadd.f32 %v529, %v531
        %534 = vrot.lane.b32.xlu0 %v524, 74
        %v535 = vpop.permute.xlu0 %534
        %v537 = vadd.f32 %v533, %v535
        %v538 = vadd.f32 %v537, 1e-08
        %v539 = vrsqrt.pop %v538
        %v540 = vmul.f32 %v520, %v539
        %542 = vrot.lane.b32.xlu0 %v539, 18
        %v543 = vpop.permute.xlu0 %542
        %v545 = vmul.f32 %v520, %v543
        %546 = vrot.lane.b32.xlu0 %v539, 36
        %v547 = vpop.permute.xlu0 %546
        %v549 = vmul.f32 %v520, %v547
        %550 = vrot.lane.b32.xlu0 %v539, 54
        %v551 = vpop.permute.xlu0 %550
        %v553 = vmul.f32 %v520, %v551
        %v554 = vlaneseq
        %v555 = vshrl.u32 %v554, 7
        %v556 = vsub.s32 0, %v555
        %v557 = vrot.slane %v523, %v556
        %v558 = vmul.f32 %v520, %v557
        %v559 = vlaneseq
        %v560 = vshrl.u32 %v559, 7
        %v561 = vsub.s32 1, %v560
        %v562 = vrot.slane %v523, %v561
        %v563 = vmul.f32 %v520, %v562
        %v564 = vlaneseq
        %v565 = vshrl.u32 %v564, 7
        %v566 = vsub.s32 2, %v565
        %v567 = vrot.slane %v523, %v566
        %v568 = vmul.f32 %v520, %v567
        %570 = vrot.lane.b32.xlu0 %v568, 57
        %v571 = vpop.permute.xlu0 %570
        %v573 = vmul.f32 %v549, %v571
        %575 = vrot.lane.b32.xlu0 %v563, 75
        %v576 = vpop.permute.xlu0 %575
        %v578 = vmul.f32 %v553, %v576
        %580 = vrot.lane.b32.xlu0 %v578, 110
        %v581 = vpop.permute.xlu0 %580
        %v583 = vsub.f32 %v573, %v581
        %v584 = vmul.f32 %v583, 2.0
        %586 = vrot.lane.b32.xlu0 %v558, 75
        %v587 = vpop.permute.xlu0 %586
        %v589 = vmul.f32 %v553, %v587
        %590 = vrot.lane.b32.xlu0 %v568, 39
        %v591 = vpop.permute.xlu0 %590
        %v593 = vmul.f32 %v545, %v591
        %595 = vrot.lane.b32.xlu0 %v593, 36
        %v596 = vpop.permute.xlu0 %595
        %v598 = vsub.f32 %v589, %v596
        %v599 = vmul.f32 %v598, 2.0
        %600 = vrot.lane.b32.xlu0 %v563, 39
        %v601 = vpop.permute.xlu0 %600
        %v603 = vmul.f32 %v545, %v601
        %604 = vrot.lane.b32.xlu0 %v558, 57
        %v605 = vpop.permute.xlu0 %604
        %v607 = vmul.f32 %v549, %v605
        %609 = vrot.lane.b32.xlu0 %v607, 110
        %v610 = vpop.permute.xlu0 %609
        %v612 = vsub.f32 %v603, %v610
        %v613 = vmul.f32 %v612, 2.0
        %615 = vrot.lane.b32.xlu0 %v584, 92
        %v616 = vpop.permute.xlu0 %615
        %v618 = vmul.f32 %v540, %v616
        %620 = vrot.lane.b32.xlu0 %v618, 107
        %v621 = vpop.permute.xlu0 %620
        %v623 = vadd.f32 %v558, %v621
        %625 = vrot.lane.b32.xlu0 %v613, 18
        %v626 = vpop.permute.xlu0 %625
        %v628 = vmul.f32 %v549, %v626
        %v629 = vmul.f32 %v553, %v599
        %631 = vrot.lane.b32.xlu0 %v629, 110
        %v632 = vpop.permute.xlu0 %631
        %v634 = vsub.f32 %v628, %v632
        %636 = vrot.lane.b32.xlu0 %v634, 71
        %v637 = vpop.permute.xlu0 %636
        %v639 = vadd.f32 %v623, %v637
        %641 = vrot.lane.b32.xlu0 %v599, 74
        %v642 = vpop.permute.xlu0 %641
        %v644 = vmul.f32 %v540, %v642
        %646 = vrot.lane.b32.xlu0 %v644, 107
        %v647 = vpop.permute.xlu0 %646
        %v649 = vadd.f32 %v563, %v647
        %650 = vrot.lane.b32.xlu0 %v584, 18
        %v651 = vpop.permute.xlu0 %650
        %v653 = vmul.f32 %v553, %v651
        %v654 = vmul.f32 %v545, %v613
        %656 = vrot.lane.b32.xlu0 %v654, 36
        %v657 = vpop.permute.xlu0 %656
        %v659 = vsub.f32 %v653, %v657
        %661 = vrot.lane.b32.xlu0 %v659, 53
        %v662 = vpop.permute.xlu0 %661
        %v664 = vadd.f32 %v649, %v662
        %665 = vrot.lane.b32.xlu0 %v613, 110
        %v666 = vpop.permute.xlu0 %665
        %v668 = vmul.f32 %v540, %v666
        %670 = vrot.lane.b32.xlu0 %v668, 107
        %v671 = vpop.permute.xlu0 %670
        %v673 = vadd.f32 %v568, %v671
        %674 = vrot.lane.b32.xlu0 %v599, 92
        %v675 = vpop.permute.xlu0 %674
        %v677 = vmul.f32 %v545, %v675
        %v678 = vmul.f32 %v549, %v584
        %680 = vrot.lane.b32.xlu0 %v678, 110
        %v681 = vpop.permute.xlu0 %680
        %v683 = vsub.f32 %v677, %v681
        %685 = vrot.lane.b32.xlu0 %v683, 89
        %v686 = vpop.permute.xlu0 %685
        %v688 = vadd.f32 %v673, %v686
        %690 = vrot.lane.b32.xlu0 %v664, 18
        %v691 = vpop.permute.xlu0 %690
        %694 = vrot.lane.b32.xlu0 %v688, 36
        %v695 = vpop.permute.xlu0 %694
        %698 = vrot.lane.b32.xlu0 %v520, 36
        %v699 = vpop.permute.xlu0 %698
        %vm701 = vcmask 146432
        %v702 = vsel %vm701, %v639, %v691
        %vm703 = vcmask 293888
        %v704 = vsel %vm703, %v702, %v695
        %vm705 = vcmask 441344
        %v706 = vsel %vm705, %v704, %v699
        %v707 = vld [vmem:[#allocation7] sm:$0xff]
        %v708 = vld [vmem:[#allocation7 + $0x8] sm:$0xff]
        %v709 = vld [vmem:[#allocation7 + $0x10] sm:$0xff]
        %v710 = vld [vmem:[#allocation7 + $0x18] sm:$0xff]
        %v711 = vld [vmem:[#allocation7 + $0x20] sm:$0xff]
        %v712 = vld [vmem:[#allocation7 + $0x28] sm:$0xff]
        %v713 = vld [vmem:[#allocation7 + $0x30] sm:$0xff]
        %v714 = vld [vmem:[#allocation7 + $0x38] sm:$0x1]
        %v715 = vlaneseq
        %v716 = vshrl.u32 %v715, 7
        %v717 = vsub.s32 3, %v716
        %v718 = vrot.slane %v523, %v717
        %vm719 = vcmask 465920
        %v721 = vsel %vm719, %v706, 0
        %vm723 = vcmask 1040384
        %v725 = vsel %vm723, %v714, 0
        %727 = vmatprep.subr.mxu0 0.0
        %728 = vmatpush1.msra.mxu0 0.0
        %729 = vmatprep.subr.mxu0 0.0
        %730 = vmatpush1.msra.mxu0 0.0
        %731 = vmatprep.subr.mxu0 0.0
        %732 = vmatpush1.msra.mxu0 0.0
        %733 = vmatprep.subr.mxu0 0.0
        %734 = vmatpush1.msra.mxu0 0.0
        %735 = vmatprep.subr.mxu0 0.0
        %736 = vmatpush1.msra.mxu0 0.0
        %737 = vmatprep.subr.mxu0 0.0
        %738 = vmatpush1.msra.mxu0 0.0
        %739 = vmatprep.subr.mxu0 0.0
        %740 = vmatpush1.msra.mxu0 0.0
        %741 = vmatprep.subr.mxu0 0.0
        %742 = vmatpush1.msra.mxu0 0.0
        %743 = vmatprep.subr.mxu0 0.0
        %744 = vmatpush1.msra.mxu0 %v725
        %745 = vmatprep.subr.mxu0 0.0
        %746 = vmatpush1.msra.mxu0 %v713
        %747 = vmatprep.subr.mxu0 0.0
        %748 = vmatpush1.msra.mxu0 %v712
        %749 = vmatprep.subr.mxu0 0.0
        %750 = vmatpush1.msra.mxu0 %v711
        %751 = vmatprep.subr.mxu0 0.0
        %752 = vmatpush1.msra.mxu0 %v710
        %753 = vmatprep.subr.mxu0 0.0
        %754 = vmatpush1.msra.mxu0 %v709
        %755 = vmatprep.subr.mxu0 0.0
        %756 = vmatpush1.msra.mxu0 %v708
        %757 = vmatprep.subr.mxu0 0.0
        %758 = vmatpush1.msra.mxu0 %v707
        %759 = vmatprep.subr.mxu0 0.0
        %760 = vmatpush2.msra.mxu0 0.0
        %761 = vmatprep.subr.mxu0 0.0
        %762 = vmatpush2.msra.mxu0 0.0
        %763 = vmatprep.subr.mxu0 0.0
        %764 = vmatpush2.msra.mxu0 0.0
        %765 = vmatprep.subr.mxu0 0.0
        %766 = vmatpush2.msra.mxu0 0.0
        %767 = vmatprep.subr.mxu0 0.0
        %768 = vmatpush2.msra.mxu0 0.0
        %769 = vmatprep.subr.mxu0 0.0
        %770 = vmatpush2.msra.mxu0 0.0
        %771 = vmatprep.subr.mxu0 0.0
        %772 = vmatpush2.msra.mxu0 0.0
        %773 = vmatprep.subr.mxu0 0.0
        %774 = vmatpush2.msra.mxu0 0.0
        %775 = vmatprep.subr.mxu0 0.0
        %776 = vmatpush2.msra.mxu0 0.0
        %777 = vmatprep.subr.mxu0 0.0
        %778 = vmatpush2.msra.mxu0 0.0
        %779 = vmatprep.subr.mxu0 0.0
        %780 = vmatpush2.msra.mxu0 0.0
        %781 = vmatprep.subr.mxu0 0.0
        %782 = vmatpush2.msra.mxu0 0.0
        %783 = vmatprep.subr.mxu0 0.0
        %784 = vmatpush2.msra.mxu0 0.0
        %785 = vmatprep.subr.mxu0 0.0
        %786 = vmatpush2.msra.mxu0 0.0
        %787 = vmatprep.subr.mxu0 0.0
        %788 = vmatpush2.msra.mxu0 0.0
        %789 = vmatprep.subr.mxu0 0.0
        %790 = vmatpush2.msra.mxu0 0.0
        %791 = vmatprep.mubr.f32.mxu0 0.0
        %792 = vmatmul.mubr.f32.gmra.mxu0 %v721
        %v793 = vpop.f32.mrf.mxu0
        %v794 = vadd.f32 %v718, %v793
        %v795 = vpop.f32.mrf.mxu0
        %796 = vdwg.mxu0
        %v797 = vadd.f32 %v794, 1e-09
        %v798 = vrcp.pop %v797
        %800 = vrot.lane.b32.xlu0 %v798, 37
        %v801 = vpop.permute.xlu0 %800
        %v803 = vmul.f32 %v794, %v801
        %v804 = vsel %vm351, %v803, %v794
        %v805 = vpack.c.bf16 %v804, %v804
        %806 = vst [vmem:[%s337] sm:$0xf] %v805
        %p807 = scmp.lt.s32.totalorder %s23, 1
        %s808 = scalar_select %p807, %s23, 1
        %s809 = smul.addr %s808, 4
        %s810 = scalar_lea.vmem %s7, %s809
        // Predicated region
        $region65: #{_lambda_.1} parent=47 // pred_check
          %p811 = pneg %p193
        $region66: #{_lambda_.1} parent=47 // pred_check_branch
          %813 = sbr.rel (%p811) target = $region68
        $region67: #{_lambda_.1} parent=47 // pred_region
          _
        $region68: #{_lambda_.1} parent=47 // pred_fallthru
          _
      $region48: #{_lambda_.1} parent=5 // pred_fallthru
        _
      %p814 = scmp.le.s32.totalorder 2, %s18
      // Predicated region
      $region69: #{_lambda_.1} parent=5 // pred_check
        %p815 = pneg %p814
      $region70: #{_lambda_.1} parent=5 // pred_check_branch
        %817 = sbr.rel (%p815) target = $region72
      $region71: #{_lambda_.1} parent=5 // pred_region
        %s818 = ssub.s32 %s18, 2
        // Predicated region
        $region73: #{_lambda_.1} parent=71 // pred_check
          %p819 = pneg %p199
        $region74: #{_lambda_.1} parent=71 // pred_check_branch
          %821 = sbr.rel (%p819) target = $region76
        $region75: #{_lambda_.1} parent=71 // pred_region
          %p822 = scmp.lt.s32.totalorder %s24, 1
          %s823 = scalar_select %p822, %s24, 1
          %s824 = smul.addr %s823, 4
          %s825 = scalar_lea.vmem %s7, %s824
        $region76: #{_lambda_.1} parent=71 // pred_fallthru
          _
      $region72: #{_lambda_.1} parent=5 // pred_fallthru
        _
    $region6: #{_lambda_.1} parent=1 // loop_footer
      %s22 = sadd.s32 1, %s18
    $region7: #{_lambda_.1} parent=1 // loop_footer_branch
      %17 = sbr.rel target = $region3
    $region8: #{_lambda_.1} parent=1 // loop_exit
      _
    %826 = vsyncpa [#allocation3], 1
    %s827 = scalar_lea.sflag [#allocation3], 1
    %828 = vsyncpa %s827, 1
    %829 = vsyncpa [#allocation5], 1
    %830 = vsyncpa [#allocation8], 1

</llo_original>
